<compile_context>
chip_gen: v7x
topology: tpu7x:2x2x1
jax: 0.10.0
libtpu: 0.0.40
codegen_flags: <defaults>
</compile_context>

<pallas_src>
import jax
import jax.numpy as jnp
from jax.experimental import pallas as pl
from jax.experimental.pallas import tpu as pltpu

HIDDEN = 256
TB_MAX = 2048  # batch-tile rows; only needs to be a multiple of 8 (sublane)


def _mlp_kernel(a_ref, s_ref, w1_ref, b1_ref, w2_ref, b2_ref, w3_ref, b3_ref,
                o_ref):
    # In-kernel concat: a cheap VMEM lane copy, no extra HBM traffic, and it
    # lets layer 1 run as a single MXU pass instead of two.
    x = jnp.concatenate([a_ref[...], s_ref[...]], axis=1)   # (TB, AD+SD) bf16

    # Layer 1: single matmul over the concatenated input; f32 accumulation.
    h1 = jnp.dot(x, w1_ref[...], preferred_element_type=jnp.float32) + b1_ref[...]
    h1 = jnp.maximum(h1, 0.0).astype(jnp.bfloat16)

    # Layer 2
    h2 = jnp.dot(h1, w2_ref[...], preferred_element_type=jnp.float32) + b2_ref[...]
    h2 = jnp.maximum(h2, 0.0).astype(jnp.bfloat16)

    # Layer 3 (no activation), stored in f32 like the PyTorch module.
    o_ref[...] = (
        jnp.dot(h2, w3_ref[...], preferred_element_type=jnp.float32) + b3_ref[...]
    ).astype(o_ref.dtype)


def _pick_batch_tile(batch):
    """Batch-tile rows: whole batch if small; otherwise >= 2 grid steps
    (so both v7x TensorCores get work) capped at TB_MAX."""
    if batch <= 256:
        return batch                       # single step; block == full array dim
    tb = (batch + 1) // 2                  # cdiv(B, 2): at least 2 grid steps
    tb = ((tb + 7) // 8) * 8               # sublane multiple (block constraint)
    return min(tb, TB_MAX)


def next_state_single_pred_forward(state, action, params):
    """state: (B, state_dim) or (state_dim,), action matching. Returns (B, state_dim)."""
    w1, b1, w2, b2, w3, b3 = params

    squeeze = (state.ndim == 1)
    if squeeze:  # PyTorch's 1-D path: torch.cat((action, state))
        state = state[None, :]
        action = action[None, :]

    B, state_dim = state.shape
    action_dim = action.shape[1]
    hidden = w2.shape[0]

    # bf16 activation-path storage (f32 accumulation inside the kernel).
    a = action.astype(jnp.bfloat16)
    s = state.astype(jnp.bfloat16)

    tb = _pick_batch_tile(B)
    grid = (pl.cdiv(B, tb),)

    batch_map = lambda i: (i, 0)   # tiled along batch
    const_map = lambda i: (0, 0)   # resident weights / biases (no re-DMA per step)

    flops = 2 * B * ((action_dim + state_dim) * hidden
                     + hidden * hidden + hidden * state_dim)
    bytes_accessed = (
        B * (action_dim + state_dim) * 2                       # bf16 inputs
        + B * state_dim * 4                                    # f32 output
        + (action_dim + state_dim + hidden) * hidden * 2       # bf16 w1 / w2
        + hidden * state_dim * 2                               # bf16 w3
        + (2 * hidden + state_dim) * 4                         # f32 biases
    )

    out = pl.pallas_call(
        _mlp_kernel,
        out_shape=jax.ShapeDtypeStruct((B, state_dim), jnp.float32),
        grid=grid,
        in_specs=[
            pl.BlockSpec((tb, action_dim), batch_map),
            pl.BlockSpec((tb, state_dim), batch_map),
            pl.BlockSpec((action_dim + state_dim, hidden), const_map),
            pl.BlockSpec((1, hidden), const_map),
            pl.BlockSpec((hidden, hidden), const_map),
            pl.BlockSpec((1, hidden), const_map),
            pl.BlockSpec((hidden, state_dim), const_map),
            pl.BlockSpec((1, state_dim), const_map),
        ],
        out_specs=pl.BlockSpec((tb, state_dim), batch_map),
        compiler_params=pltpu.CompilerParams(
            dimension_semantics=("parallel",),
            vmem_limit_bytes=32 * 1024 * 1024,
        ),
        cost_estimate=pl.CostEstimate(
            flops=flops, transcendentals=0, bytes_accessed=bytes_accessed),
    )(a, s, w1, b1, w2, b2, w3, b3)

    if squeeze:
        out = out[0]
    return out


def init_params(key, state_dim, action_dim, hidden=HIDDEN):
    """nn.Linear-style init (U(-1/sqrt(fan_in), 1/sqrt(fan_in))).

    Weights are (in_features, out_features) — the transpose of PyTorch's
    (out, in) — and layer-1's input rows follow the PyTorch concat order
    (action rows first, then state rows).  Weights are stored bf16; biases
    stay f32 with shape (1, out) to remain 2-D / lane-friendly.
    """
    def linear(k, fan_in, fan_out):
        kw, kb = jax.random.split(k)
        bound = 1.0 / (float(fan_in) ** 0.5)
        w = jax.random.uniform(kw, (fan_in, fan_out), jnp.float32, -bound, bound)
        b = jax.random.uniform(kb, (1, fan_out), jnp.float32, -bound, bound)
        return w, b

    k1, k2, k3 = jax.random.split(key, 3)
    w1, b1 = linear(k1, state_dim + action_dim, hidden)
    w2, b2 = linear(k2, hidden, hidden)
    w3, b3 = linear(k3, hidden, state_dim)

    return (w1.astype(jnp.bfloat16), b1,
            w2.astype(jnp.bfloat16), b2,
            w3.astype(jnp.bfloat16), b3)


def reference_forward_bf16(state, action, params):
    """Pure-JAX reference mirroring the kernel's bf16-storage / f32-accumulate numerics."""
    w1, b1, w2, b2, w3, b3 = params
    f32 = jnp.float32
    x = jnp.concatenate([action, state], axis=-1).astype(jnp.bfloat16).astype(f32)
    h1 = jnp.maximum(x @ w1.astype(f32) + b1, 0.0).astype(jnp.bfloat16).astype(f32)
    h2 = jnp.maximum(h1 @ w2.astype(f32) + b2, 0.0).astype(jnp.bfloat16).astype(f32)
    return h2 @ w3.astype(f32) + b3


def reference_forward_f32(state, action, params):
    """Full-f32 reference (true fp32 forward with the same stored weights) to
    bound the bf16-activation drift vs. the original PyTorch numerics."""
    w1, b1, w2, b2, w3, b3 = params
    f32 = jnp.float32
    x = jnp.concatenate([action, state], axis=-1).astype(f32)
    h1 = jnp.maximum(x @ w1.astype(f32) + b1, 0.0)
    h2 = jnp.maximum(h1 @ w2.astype(f32) + b2, 0.0)
    return h2 @ w3.astype(f32) + b3


if __name__ == "__main__":
    key = jax.random.PRNGKey(0)
    state_dim = 8
    action_dim = 4

    key, kp = jax.random.split(key)
    params = init_params(kp, state_dim, action_dim)

    # --- Small batch (single grid step) ---------------------------------
    key, ks, ka = jax.random.split(key, 3)
    state = jax.random.normal(ks, (2, state_dim), jnp.float32)
    action = jax.random.normal(ka, (2, action_dim), jnp.float32)

    out = jax.block_until_ready(next_state_single_pred_forward(state, action, params))
    assert out.shape == (2, state_dim)
    ref_bf16 = reference_forward_bf16(state, action, params)
    ref_f32 = reference_forward_f32(state, action, params)
    assert jnp.allclose(out, ref_bf16, atol=2e-3, rtol=2e-3), "mismatch vs bf16 reference"
    assert jnp.allclose(out, ref_f32, atol=3e-2, rtol=3e-2), "drift vs f32 reference"

    # --- Ragged batch (2 grid steps, padded tail block) ------------------
    key, ks, ka = jax.random.split(key, 3)
    Bn = 270
    state_b = jax.random.normal(ks, (Bn, state_dim), jnp.float32)
    action_b = jax.random.normal(ka, (Bn, action_dim), jnp.float32)
    out_b = jax.block_until_ready(
        next_state_single_pred_forward(state_b, action_b, params))
    assert out_b.shape == (Bn, state_dim)
    assert jnp.allclose(out_b, reference_forward_bf16(state_b, action_b, params),
                        atol=2e-3, rtol=2e-3), "ragged-batch mismatch"

    # --- 1-D input path (torch.cat((action, state))) ---------------------
    out_1d = jax.block_until_ready(
        next_state_single_pred_forward(state[0], action[0], params))
    assert out_1d.shape == (state_dim,)
    assert jnp.allclose(out_1d, ref_bf16[0], atol=2e-3, rtol=2e-3), "1-D path mismatch"

    print("KERNEL_OK")
</pallas_src>

<mosaic_0001>
module attributes {stable_mosaic.version = 11 : i64} {
  func.func @_mlp_kernel(%arg0: i32, %arg1: memref<2x4xbf16, #tpu.memory_space<vmem>>, %arg2: memref<2x8xbf16, #tpu.memory_space<vmem>>, %arg3: memref<12x256xbf16, #tpu.memory_space<vmem>>, %arg4: memref<1x256xf32, #tpu.memory_space<vmem>>, %arg5: memref<256x256xbf16, #tpu.memory_space<vmem>>, %arg6: memref<1x256xf32, #tpu.memory_space<vmem>>, %arg7: memref<256x8xbf16, #tpu.memory_space<vmem>>, %arg8: memref<1x8xf32, #tpu.memory_space<vmem>>, %arg9: memref<2x8xf32, #tpu.memory_space<vmem>>) attributes {dimension_semantics = [#tpu.dimension_semantics<parallel>], iteration_bounds = array<i64: 1>, scalar_prefetch = 0 : i64, scratch_operands = 0 : i64, tpu.core_type = #tpu.core_type<tc>, window_params = [{transform_indices = @transform_0, window_bounds = array<i64: 2, 4>}, {transform_indices = @transform_1, window_bounds = array<i64: 2, 8>}, {pipeline_mode = #tpu.pipeline_mode<synchronous>, transform_indices = @transform_2, window_bounds = array<i64: 12, 256>}, {pipeline_mode = #tpu.pipeline_mode<synchronous>, transform_indices = @transform_3, window_bounds = array<i64: 1, 256>}, {pipeline_mode = #tpu.pipeline_mode<synchronous>, transform_indices = @transform_4, window_bounds = array<i64: 256, 256>}, {pipeline_mode = #tpu.pipeline_mode<synchronous>, transform_indices = @transform_5, window_bounds = array<i64: 1, 256>}, {pipeline_mode = #tpu.pipeline_mode<synchronous>, transform_indices = @transform_6, window_bounds = array<i64: 256, 8>}, {pipeline_mode = #tpu.pipeline_mode<synchronous>, transform_indices = @transform_7, window_bounds = array<i64: 1, 8>}, {transform_indices = @transform_8, window_bounds = array<i64: 2, 8>}]} {
    %c0 = arith.constant 0 : index
    %c0_0 = arith.constant 0 : index
    %0 = vector.load %arg1[%c0, %c0_0] : memref<2x4xbf16, #tpu.memory_space<vmem>>, vector<2x4xbf16>
    %c0_1 = arith.constant 0 : index
    %c0_2 = arith.constant 0 : index
    %1 = vector.load %arg2[%c0_1, %c0_2] : memref<2x8xbf16, #tpu.memory_space<vmem>>, vector<2x8xbf16>
    %2 = tpu.concatenate %0, %1 in 1 : vector<2x4xbf16>, vector<2x8xbf16> -> vector<2x12xbf16>
    %c0_3 = arith.constant 0 : index
    %c0_4 = arith.constant 0 : index
    %3 = vector.load %arg3[%c0_3, %c0_4] : memref<12x256xbf16, #tpu.memory_space<vmem>>, vector<12x256xbf16>
    %cst = arith.constant dense<0.000000e+00> : vector<2x256xf32>
    %4 = tpu.matmul %2, %3, %cst {dimension_numbers = #tpu.dot_dimension_numbers<[1], [0], [0], [1], [0, 0, 1, 1], [], []>} : vector<2x12xbf16>, vector<12x256xbf16>, vector<2x256xf32> -> vector<2x256xf32>
    %c0_5 = arith.constant 0 : index
    %c0_6 = arith.constant 0 : index
    %5 = vector.load %arg4[%c0_5, %c0_6] : memref<1x256xf32, #tpu.memory_space<vmem>>, vector<1x256xf32>
    %6 = vector.broadcast %5 : vector<1x256xf32> to vector<2x256xf32>
    %7 = arith.addf %4, %6 : vector<2x256xf32>
    %cst_7 = arith.constant 0.000000e+00 : f32
    %8 = vector.broadcast %cst_7 : f32 to vector<2x256xf32>
    %9 = arith.maximumf %7, %8 : vector<2x256xf32>
    %10 = arith.truncf %9 : vector<2x256xf32> to vector<2x256xbf16>
    %c0_8 = arith.constant 0 : index
    %c0_9 = arith.constant 0 : index
    %11 = vector.load %arg5[%c0_8, %c0_9] : memref<256x256xbf16, #tpu.memory_space<vmem>>, vector<256x256xbf16>
    %cst_10 = arith.constant dense<0.000000e+00> : vector<2x256xf32>
    %12 = tpu.matmul %10, %11, %cst_10 {dimension_numbers = #tpu.dot_dimension_numbers<[1], [0], [0], [1], [0, 0, 1, 1], [], []>} : vector<2x256xbf16>, vector<256x256xbf16>, vector<2x256xf32> -> vector<2x256xf32>
    %c0_11 = arith.constant 0 : index
    %c0_12 = arith.constant 0 : index
    %13 = vector.load %arg6[%c0_11, %c0_12] : memref<1x256xf32, #tpu.memory_space<vmem>>, vector<1x256xf32>
    %14 = vector.broadcast %13 : vector<1x256xf32> to vector<2x256xf32>
    %15 = arith.addf %12, %14 : vector<2x256xf32>
    %cst_13 = arith.constant 0.000000e+00 : f32
    %16 = vector.broadcast %cst_13 : f32 to vector<2x256xf32>
    %17 = arith.maximumf %15, %16 : vector<2x256xf32>
    %18 = arith.truncf %17 : vector<2x256xf32> to vector<2x256xbf16>
    %c0_14 = arith.constant 0 : index
    %c0_15 = arith.constant 0 : index
    %19 = vector.load %arg7[%c0_14, %c0_15] : memref<256x8xbf16, #tpu.memory_space<vmem>>, vector<256x8xbf16>
    %cst_16 = arith.constant dense<0.000000e+00> : vector<2x8xf32>
    %20 = tpu.matmul %18, %19, %cst_16 {dimension_numbers = #tpu.dot_dimension_numbers<[1], [0], [0], [1], [0, 0, 1, 1], [], []>} : vector<2x256xbf16>, vector<256x8xbf16>, vector<2x8xf32> -> vector<2x8xf32>
    %c0_17 = arith.constant 0 : index
    %c0_18 = arith.constant 0 : index
    %21 = vector.load %arg8[%c0_17, %c0_18] : memref<1x8xf32, #tpu.memory_space<vmem>>, vector<1x8xf32>
    %22 = vector.broadcast %21 : vector<1x8xf32> to vector<2x8xf32>
    %23 = arith.addf %20, %22 : vector<2x8xf32>
    %c0_19 = arith.constant 0 : index
    %c0_20 = arith.constant 0 : index
    %24 = vector.load %arg9[%c0_19, %c0_20] : memref<2x8xf32, #tpu.memory_space<vmem>>, vector<2x8xf32>
    tpu.vector_store %arg9[%c0_19, %c0_20], %23 {strides = array<i32>} : memref<2x8xf32, #tpu.memory_space<vmem>>, vector<2x8xf32>,
    return
  }
  func.func @transform_0(%arg0: i32) -> (i32, i32) {
    %c0_i32 = arith.constant 0 : i32
    %c0_i32_0 = arith.constant 0 : i32
    return %arg0, %c0_i32 : i32, i32
  }
  func.func @transform_1(%arg0: i32) -> (i32, i32) {
    %c0_i32 = arith.constant 0 : i32
    %c0_i32_0 = arith.constant 0 : i32
    return %arg0, %c0_i32 : i32, i32
  }
  func.func @transform_2(%arg0: i32) -> (i32, i32) {
    %c0_i32 = arith.constant 0 : i32
    %c0_i32_0 = arith.constant 0 : i32
    %c0_i32_1 = arith.constant 0 : i32
    return %c0_i32, %c0_i32_0 : i32, i32
  }
  func.func @transform_3(%arg0: i32) -> (i32, i32) {
    %c0_i32 = arith.constant 0 : i32
    %c0_i32_0 = arith.constant 0 : i32
    %c0_i32_1 = arith.constant 0 : i32
    return %c0_i32, %c0_i32_0 : i32, i32
  }
  func.func @transform_4(%arg0: i32) -> (i32, i32) {
    %c0_i32 = arith.constant 0 : i32
    %c0_i32_0 = arith.constant 0 : i32
    %c0_i32_1 = arith.constant 0 : i32
    return %c0_i32, %c0_i32_0 : i32, i32
  }
  func.func @transform_5(%arg0: i32) -> (i32, i32) {
    %c0_i32 = arith.constant 0 : i32
    %c0_i32_0 = arith.constant 0 : i32
    %c0_i32_1 = arith.constant 0 : i32
    return %c0_i32, %c0_i32_0 : i32, i32
  }
  func.func @transform_6(%arg0: i32) -> (i32, i32) {
    %c0_i32 = arith.constant 0 : i32
    %c0_i32_0 = arith.constant 0 : i32
    %c0_i32_1 = arith.constant 0 : i32
    return %c0_i32, %c0_i32_0 : i32, i32
  }
  func.func @transform_7(%arg0: i32) -> (i32, i32) {
    %c0_i32 = arith.constant 0 : i32
    %c0_i32_0 = arith.constant 0 : i32
    %c0_i32_1 = arith.constant 0 : i32
    return %c0_i32, %c0_i32_0 : i32, i32
  }
  func.func @transform_8(%arg0: i32) -> (i32, i32) {
    %c0_i32 = arith.constant 0 : i32
    %c0_i32_0 = arith.constant 0 : i32
    return %arg0, %c0_i32 : i32, i32
  }
}

</mosaic_0001>

<llo_original>
// kernel: tpu_custom_call.1
$region0: #{tpu_custom_call.1}
  #allocation0 [shape = 'u32[]', space=smem, size = 0x4, offset = 0x4, fixed_abs, tag = 'smem constant byte address 0x4 - core index']
  #allocation1 [shape = 'u32[144,128]{1,0:T(1,128)}', space=vmem, size = 0x12000, scoped, tag = 'internal scratch']
  %s0 = inlined_call_operand.vmem [shape: bf16[2,4], index: 0, kind: input, shape index: {}]
  %s1 = inlined_call_operand.vmem [shape: bf16[2,8], index: 1, kind: input, shape index: {}]
  %s2 = inlined_call_operand.vmem [shape: bf16[12,256], index: 2, kind: input, shape index: {}]
  %s3 = inlined_call_operand.vmem [shape: f32[1,256], index: 3, kind: input, shape index: {}]
  %s4 = inlined_call_operand.hbm [shape: bf16[256,256], index: 4, kind: input, shape index: {}]
  %s5 = inlined_call_operand.vmem [shape: f32[1,256], index: 5, kind: input, shape index: {}]
  %s6 = inlined_call_operand.vmem [shape: bf16[256,8], index: 6, kind: input, shape index: {}]
  %s7 = inlined_call_operand.vmem [shape: f32[1,8], index: 7, kind: input, shape index: {}]
  %s8 = inlined_call_operand.hbm [shape: f32[2,8], index: 8, kind: output, shape index: {}]
  %s9 = sld [smem:[#allocation0]]
  $region46: #{tpu_custom_call.1} parent=0
    _
  %s11 = ssub.s32 1, %s9
  %s12 = scalar_select 0, %s11, %s9
  $region1: #{tpu_custom_call.1} parent=0
    #allocation2 [shape = 'u8[131072]{0}', space=vmem, size = 0x20000, scoped, tag = 'input window, operand 4, single buffered']
    #allocation3 [shape = 's32[1]{0}', space=sflag, size = 0x4, scoped, tag = 'scoped memory for tpu_custom_call.1']
    #allocation4 [shape = 's32[1]{0}', space=sflag, size = 0x4, scoped, tag = 'scoped memory for tpu_custom_call.1']
    #allocation5 [shape = 'u8[1024]{0}', space=vmem, size = 0x400, scoped, tag = 'output window, operand 0, single buffered']
    %13 = vsyncpa [#allocation3], 0
    %14 = vsyncpa [#allocation4], 0
    // Predicated region
    $region2: #{tpu_custom_call.1} parent=1 // pred_check
      _
    $region3: #{tpu_custom_call.1} parent=1 // pred_check_branch
      %16 = sbr.rel (0) target = $region5
    $region4: #{tpu_custom_call.1} parent=1 // pred_region
      _
    $region5: #{tpu_custom_call.1} parent=1 // pred_fallthru
      _
    // Predicated region
    $region6: #{tpu_custom_call.1} parent=1 // pred_check
      _
    $region7: #{tpu_custom_call.1} parent=1 // pred_check_branch
      %18 = sbr.rel (0) target = $region9
    $region8: #{tpu_custom_call.1} parent=1 // pred_region
      _
    $region9: #{tpu_custom_call.1} parent=1 // pred_fallthru
      _
    // Predicated region
    $region10: #{tpu_custom_call.1} parent=1 // pred_check
      _
    $region11: #{tpu_custom_call.1} parent=1 // pred_check_branch
      %20 = sbr.rel (0) target = $region13
    $region12: #{tpu_custom_call.1} parent=1 // pred_region
      _
    $region13: #{tpu_custom_call.1} parent=1 // pred_fallthru
      _
    // Predicated region
    $region14: #{tpu_custom_call.1} parent=1 // pred_check
      _
    $region15: #{tpu_custom_call.1} parent=1 // pred_check_branch
      %22 = sbr.rel (0) target = $region17
    $region16: #{tpu_custom_call.1} parent=1 // pred_region
      _
    $region17: #{tpu_custom_call.1} parent=1 // pred_fallthru
      _
    // Predicated region
    $region18: #{tpu_custom_call.1} parent=1 // pred_check
      _
    $region19: #{tpu_custom_call.1} parent=1 // pred_check_branch
      %24 = sbr.rel (0) target = $region21
    $region20: #{tpu_custom_call.1} parent=1 // pred_region
      %s26 = ssub.s32 4096, 4096
      %27 = vsyncadd [#allocation3], %s26
      %s28 = sshll.u32 [#allocation2], 4
      %s29 = int_to_ptr.vmem [resolvable:$true] %s28
      %34 = dma.hbm_to_vmem [thread:$0]  %s4, 4096, %s29, [#allocation3], 128, 128, 8
    $region21: #{tpu_custom_call.1} parent=1 // pred_fallthru
      _
    // Predicated region
    $region22: #{tpu_custom_call.1} parent=1 // pred_check
      _
    $region23: #{tpu_custom_call.1} parent=1 // pred_check_branch
      %36 = sbr.rel (0) target = $region25
    $region24: #{tpu_custom_call.1} parent=1 // pred_region
      _
    $region25: #{tpu_custom_call.1} parent=1 // pred_fallthru
      _
    // Predicated region
    $region26: #{tpu_custom_call.1} parent=1 // pred_check
      _
    $region27: #{tpu_custom_call.1} parent=1 // pred_check_branch
      %38 = sbr.rel (0) target = $region29
    $region28: #{tpu_custom_call.1} parent=1 // pred_region
      _
    $region29: #{tpu_custom_call.1} parent=1 // pred_fallthru
      _
    // Predicated region
    $region30: #{tpu_custom_call.1} parent=1 // pred_check
      _
    $region31: #{tpu_custom_call.1} parent=1 // pred_check_branch
      %40 = sbr.rel (0) target = $region33
    $region32: #{tpu_custom_call.1} parent=1 // pred_region
      _
    $region33: #{tpu_custom_call.1} parent=1 // pred_fallthru
      _
    // Predicated region
    $region34: #{tpu_custom_call.1} parent=1 // pred_check
      _
    $region35: #{tpu_custom_call.1} parent=1 // pred_check_branch
      %42 = sbr.rel (0) target = $region37
    $region36: #{tpu_custom_call.1} parent=1 // pred_region
      %43 = dma.done [#allocation3], 4096
    $region37: #{tpu_custom_call.1} parent=1 // pred_fallthru
      _
    %v45 = vld [vmem:[%s0] sm:$0x1]
    %v46 = vld [vmem:[%s1] sm:$0x1]
    %v49 = vunpack.c.l.s4 1966171168
    %v50 = vunpack.c.0.s8 %v49
    %v51 = vlaneseq
    %v52 = vshrl.u32 %v51, 7
    %v53 = vsub.s32 %v50, %v52
    %v54 = vrot.slane %v46, %v53
    %v56 = vunpack.c.l.s4 1966171168
    %v57 = vunpack.c.0.s8 %v56
    %v58 = vlaneseq
    %v59 = vshrl.u32 %v58, 7
    %v60 = vsub.s32 %v57, %v59
    %v61 = vrot.slane %v54, %v60
    %62 = vrot.lane.b32.xlu0 %v61, 4
    %v63 = vpop.permute.xlu0 %62
    %vm64 = vcmask 31744
    %v67 = vsel %vm64, %v45, %v63
    %v68 = vld [vmem:[%s2] sm:$0xff]
    %v69 = vld [vmem:[%s2 + $0x8] sm:$0x33]
    %v70 = vld [vmem:[%s3] sm:$0x3]
    %v72 = vlaneseq
    %v73 = vshrl.u32 %v72, 7
    %v74 = vsub.s32 0, %v73
    %v75 = vrot.slane %v70, %v74
    %v76 = vlaneseq
    %v77 = vshrl.u32 %v76, 7
    %v78 = vsub.s32 1, %v77
    %v79 = vrot.slane %v70, %v78
    %v84 = vunpack.c.l.b16 %v68
    %v85 = vunpack.c.h.b16 %v68
    %v86 = vunpack.c.l.b16 %v69
    %v87 = vunpack.c.h.b16 %v69
    %v88 = vpack.c.b16 %v86, %v84
    %v89 = vpack.c.b16 %v87, %v85
    %vm90 = vcmask 97280
    %v91 = vsel %vm90, %v67, 0
    %vm93 = vcmask 1045504
    %v95 = vsel %vm93, %v88, 0
    %v98 = vsel %vm93, %v89, 0
    %100 = vmatprep.subr.bf16.mxu0 %v98
    %101 = vmatpush1.bf16.msra.mxu0 %v95
    %102 = vmatprep.subr.bf16.mxu0 0
    %103 = vmatpush1.bf16.msra.mxu0 0
    %104 = vmatprep.subr.bf16.mxu0 0
    %105 = vmatpush1.bf16.msra.mxu0 0
    %106 = vmatprep.subr.bf16.mxu0 0
    %107 = vmatpush1.bf16.msra.mxu0 0
    %108 = vmatprep.subr.bf16.mxu0 0
    %109 = vmatpush1.bf16.msra.mxu0 0
    %110 = vmatprep.subr.bf16.mxu0 0
    %111 = vmatpush1.bf16.msra.mxu0 0
    %112 = vmatprep.subr.bf16.mxu0 0
    %113 = vmatpush1.bf16.msra.mxu0 0
    %114 = vmatprep.subr.bf16.mxu0 0
    %115 = vmatpush1.bf16.msra.mxu0 0
    %116 = vmatprep.subr.bf16.mxu0 0
    %117 = vmatpush1.bf16.msra.mxu0 0
    %118 = vmatprep.subr.bf16.mxu0 0
    %119 = vmatpush1.bf16.msra.mxu0 0
    %120 = vmatprep.subr.bf16.mxu0 0
    %121 = vmatpush1.bf16.msra.mxu0 0
    %122 = vmatprep.subr.bf16.mxu0 0
    %123 = vmatpush1.bf16.msra.mxu0 0
    %124 = vmatprep.subr.bf16.mxu0 0
    %125 = vmatpush1.bf16.msra.mxu0 0
    %126 = vmatprep.subr.bf16.mxu0 0
    %127 = vmatpush1.bf16.msra.mxu0 0
    %128 = vmatprep.subr.bf16.mxu0 0
    %129 = vmatpush1.bf16.msra.mxu0 0
    %130 = vmatprep.subr.bf16.mxu0 0
    %131 = vmatpush1.bf16.msra.mxu0 0
    %132 = vmatprep.mubr.bf16.mxu0 0
    %133 = vmatmul.mubr.bf16.gmra.mrb[0].mxu0 %v91
    %v134 = vpop.f32.mrb[0].mxu0
    %v135 = vadd.f32 %v75, %v134
    %v136 = vpop.f32.mrb[0].mxu0
    %v137 = vadd.f32 %v79, %v136
    %v138 = vpop.f32.mrb[0].mxu0
    %v139 = vpop.f32.mrb[0].mxu0
    %140 = vdwg.mxu0
    %v141 = vmax.f32 %v135, 0.0
    %v142 = vmax.f32 %v137, 0.0
    %v143 = vpack.c.bf16 %v141, %v141
    %v144 = vpack.c.bf16 %v142, %v142
    %v145 = vld [vmem:[#allocation2] sm:$0xff]
    %v146 = vld [vmem:[#allocation2 + $0x8] sm:$0xff]
    %v147 = vld [vmem:[#allocation2 + $0x10] sm:$0xff]
    %v148 = vld [vmem:[#allocation2 + $0x18] sm:$0xff]
    %v149 = vld [vmem:[#allocation2 + $0x20] sm:$0xff]
    %v150 = vld [vmem:[#allocation2 + $0x28] sm:$0xff]
    %v151 = vld [vmem:[#allocation2 + $0x30] sm:$0xff]
    %v152 = vld [vmem:[#allocation2 + $0x38] sm:$0xff]
    %v153 = vld [vmem:[#allocation2 + $0x40] sm:$0xff]
    %v154 = vld [vmem:[#allocation2 + $0x48] sm:$0xff]
    %v155 = vld [vmem:[#allocation2 + $0x50] sm:$0xff]
    %v156 = vld [vmem:[#allocation2 + $0x58] sm:$0xff]
    %v157 = vld [vmem:[#allocation2 + $0x60] sm:$0xff]
    %v158 = vld [vmem:[#allocation2 + $0x68] sm:$0xff]
    %v159 = vld [vmem:[#allocation2 + $0x70] sm:$0xff]
    %v160 = vld [vmem:[#allocation2 + $0x78] sm:$0xff]
    %v161 = vld [vmem:[#allocation2 + $0x80] sm:$0xff]
    %v162 = vld [vmem:[#allocation2 + $0x88] sm:$0xff]
    %v163 = vld [vmem:[#allocation2 + $0x90] sm:$0xff]
    %v164 = vld [vmem:[#allocation2 + $0x98] sm:$0xff]
    %v165 = vld [vmem:[#allocation2 + $0xa0] sm:$0xff]
    %v166 = vld [vmem:[#allocation2 + $0xa8] sm:$0xff]
    %v167 = vld [vmem:[#allocation2 + $0xb0] sm:$0xff]
    %v168 = vld [vmem:[#allocation2 + $0xb8] sm:$0xff]
    %v169 = vld [vmem:[#allocation2 + $0xc0] sm:$0xff]
    %v170 = vld [vmem:[#allocation2 + $0xc8] sm:$0xff]
    %v171 = vld [vmem:[#allocation2 + $0xd0] sm:$0xff]
    %v172 = vld [vmem:[#allocation2 + $0xd8] sm:$0xff]
    %v173 = vld [vmem:[#allocation2 + $0xe0] sm:$0xff]
    %v174 = vld [vmem:[#allocation2 + $0xe8] sm:$0xff]
    %v175 = vld [vmem:[#allocation2 + $0xf0] sm:$0xff]
    %v176 = vld [vmem:[#allocation2 + $0xf8] sm:$0xff]
    %v177 = vld [vmem:[%s5] sm:$0x3]
    %v179 = vlaneseq
    %v180 = vshrl.u32 %v179, 7
    %v181 = vsub.s32 0, %v180
    %v182 = vrot.slane %v177, %v181
    %v183 = vlaneseq
    %v184 = vshrl.u32 %v183, 7
    %v185 = vsub.s32 1, %v184
    %v186 = vrot.slane %v177, %v185
    %v221 = vunpack.c.l.b16 %v145
    %v222 = vunpack.c.h.b16 %v145
    %v223 = vunpack.c.l.b16 %v146
    %v224 = vunpack.c.h.b16 %v146
    %v225 = vunpack.c.l.b16 %v147
    %v226 = vunpack.c.h.b16 %v147
    %v227 = vunpack.c.l.b16 %v148
    %v228 = vunpack.c.h.b16 %v148
    %v229 = vunpack.c.l.b16 %v149
    %v230 = vunpack.c.h.b16 %v149
    %v231 = vunpack.c.l.b16 %v150
    %v232 = vunpack.c.h.b16 %v150
    %v233 = vunpack.c.l.b16 %v151
    %v234 = vunpack.c.h.b16 %v151
    %v235 = vunpack.c.l.b16 %v152
    %v236 = vunpack.c.h.b16 %v152
    %v237 = vunpack.c.l.b16 %v153
    %v238 = vunpack.c.h.b16 %v153
    %v239 = vunpack.c.l.b16 %v154
    %v240 = vunpack.c.h.b16 %v154
    %v241 = vunpack.c.l.b16 %v155
    %v242 = vunpack.c.h.b16 %v155
    %v243 = vunpack.c.l.b16 %v156
    %v244 = vunpack.c.h.b16 %v156
    %v245 = vunpack.c.l.b16 %v157
    %v246 = vunpack.c.h.b16 %v157
    %v247 = vunpack.c.l.b16 %v158
    %v248 = vunpack.c.h.b16 %v158
    %v249 = vunpack.c.l.b16 %v159
    %v250 = vunpack.c.h.b16 %v159
    %v251 = vunpack.c.l.b16 %v160
    %v252 = vunpack.c.h.b16 %v160
    %v253 = vunpack.c.l.b16 %v161
    %v254 = vunpack.c.h.b16 %v161
    %v255 = vunpack.c.l.b16 %v162
    %v256 = vunpack.c.h.b16 %v162
    %v257 = vunpack.c.l.b16 %v163
    %v258 = vunpack.c.h.b16 %v163
    %v259 = vunpack.c.l.b16 %v164
    %v260 = vunpack.c.h.b16 %v164
    %v261 = vunpack.c.l.b16 %v165
    %v262 = vunpack.c.h.b16 %v165
    %v263 = vunpack.c.l.b16 %v166
    %v264 = vunpack.c.h.b16 %v166
    %v265 = vunpack.c.l.b16 %v167
    %v266 = vunpack.c.h.b16 %v167
    %v267 = vunpack.c.l.b16 %v168
    %v268 = vunpack.c.h.b16 %v168
    %v269 = vunpack.c.l.b16 %v169
    %v270 = vunpack.c.h.b16 %v169
    %v271 = vunpack.c.l.b16 %v170
    %v272 = vunpack.c.h.b16 %v170
    %v273 = vunpack.c.l.b16 %v171
    %v274 = vunpack.c.h.b16 %v171
    %v275 = vunpack.c.l.b16 %v172
    %v276 = vunpack.c.h.b16 %v172
    %v277 = vunpack.c.l.b16 %v173
    %v278 = vunpack.c.h.b16 %v173
    %v279 = vunpack.c.l.b16 %v174
    %v280 = vunpack.c.h.b16 %v174
    %v281 = vunpack.c.l.b16 %v175
    %v282 = vunpack.c.h.b16 %v175
    %v283 = vunpack.c.l.b16 %v176
    %v284 = vunpack.c.h.b16 %v176
    %v285 = vpack.c.b16 %v223, %v221
    %v286 = vpack.c.b16 %v224, %v222
    %v287 = vpack.c.b16 %v227, %v225
    %v288 = vpack.c.b16 %v228, %v226
    %v289 = vpack.c.b16 %v231, %v229
    %v290 = vpack.c.b16 %v232, %v230
    %v291 = vpack.c.b16 %v235, %v233
    %v292 = vpack.c.b16 %v236, %v234
    %v293 = vpack.c.b16 %v239, %v237
    %v294 = vpack.c.b16 %v240, %v238
    %v295 = vpack.c.b16 %v243, %v241
    %v296 = vpack.c.b16 %v244, %v242
    %v297 = vpack.c.b16 %v247, %v245
    %v298 = vpack.c.b16 %v248, %v246
    %v299 = vpack.c.b16 %v251, %v249
    %v300 = vpack.c.b16 %v252, %v250
    %v301 = vpack.c.b16 %v255, %v253
    %v302 = vpack.c.b16 %v256, %v254
    %v303 = vpack.c.b16 %v259, %v257
    %v304 = vpack.c.b16 %v260, %v258
    %v305 = vpack.c.b16 %v263, %v261
    %v306 = vpack.c.b16 %v264, %v262
    %v307 = vpack.c.b16 %v267, %v265
    %v308 = vpack.c.b16 %v268, %v266
    %v309 = vpack.c.b16 %v271, %v269
    %v310 = vpack.c.b16 %v272, %v270
    %v311 = vpack.c.b16 %v275, %v273
    %v312 = vpack.c.b16 %v276, %v274
    %v313 = vpack.c.b16 %v279, %v277
    %v314 = vpack.c.b16 %v280, %v278
    %v315 = vpack.c.b16 %v283, %v281
    %v316 = vpack.c.b16 %v284, %v282
    %349 = vmatprep.subr.bf16.mxu0 %v286
    %350 = vmatpush1.bf16.msra.mxu0 %v285
    %351 = vmatprep.subr.bf16.mxu0 %v288
    %352 = vmatpush1.bf16.msra.mxu0 %v287
    %353 = vmatprep.subr.bf16.mxu0 %v290
    %354 = vmatpush1.bf16.msra.mxu0 %v289
    %355 = vmatprep.subr.bf16.mxu0 %v292
    %356 = vmatpush1.bf16.msra.mxu0 %v291
    %357 = vmatprep.subr.bf16.mxu0 %v294
    %358 = vmatpush1.bf16.msra.mxu0 %v293
    %359 = vmatprep.subr.bf16.mxu0 %v296
    %360 = vmatpush1.bf16.msra.mxu0 %v295
    %361 = vmatprep.subr.bf16.mxu0 %v298
    %362 = vmatpush1.bf16.msra.mxu0 %v297
    %363 = vmatprep.subr.bf16.mxu0 %v300
    %364 = vmatpush1.bf16.msra.mxu0 %v299
    %365 = vmatprep.subr.bf16.mxu0 %v302
    %366 = vmatpush1.bf16.msra.mxu0 %v301
    %367 = vmatprep.subr.bf16.mxu0 %v304
    %368 = vmatpush1.bf16.msra.mxu0 %v303
    %369 = vmatprep.subr.bf16.mxu0 %v306
    %370 = vmatpush1.bf16.msra.mxu0 %v305
    %371 = vmatprep.subr.bf16.mxu0 %v308
    %372 = vmatpush1.bf16.msra.mxu0 %v307
    %373 = vmatprep.subr.bf16.mxu0 %v310
    %374 = vmatpush1.bf16.msra.mxu0 %v309
    %375 = vmatprep.subr.bf16.mxu0 %v312
    %376 = vmatpush1.bf16.msra.mxu0 %v311
    %377 = vmatprep.subr.bf16.mxu0 %v314
    %378 = vmatpush1.bf16.msra.mxu0 %v313
    %379 = vmatprep.subr.bf16.mxu0 %v316
    %380 = vmatpush1.bf16.msra.mxu0 %v315
    %381 = vmatprep.mubr.bf16.mxu0 %v144
    %382 = vmatmul.mubr.bf16.gmra.mrb[0].mxu0 %v143
    %v383 = vpop.f32.mrb[0].mxu0
    %v384 = vadd.f32 %v182, %v383
    %v385 = vpop.f32.mrb[0].mxu0
    %v386 = vadd.f32 %v186, %v385
    %v387 = vpop.f32.mrb[0].mxu0
    %v388 = vpop.f32.mrb[0].mxu0
    %389 = vdwg.mxu0
    %v390 = vmax.f32 %v384, 0.0
    %v391 = vmax.f32 %v386, 0.0
    %v392 = vpack.c.bf16 %v390, %v390
    %v393 = vpack.c.bf16 %v391, %v391
    %v394 = vld [vmem:[%s6] sm:$0xf]
    %v395 = vld [vmem:[%s6 + $0x4] sm:$0xf]
    %v396 = vld [vmem:[%s6 + $0x8] sm:$0xf]
    %v397 = vld [vmem:[%s6 + $0xc] sm:$0xf]
    %v398 = vld [vmem:[%s6 + $0x10] sm:$0xf]
    %v399 = vld [vmem:[%s6 + $0x14] sm:$0xf]
    %v400 = vld [vmem:[%s6 + $0x18] sm:$0xf]
    %v401 = vld [vmem:[%s6 + $0x1c] sm:$0xf]
    %v402 = vld [vmem:[%s6 + $0x20] sm:$0xf]
    %v403 = vld [vmem:[%s6 + $0x24] sm:$0xf]
    %v404 = vld [vmem:[%s6 + $0x28] sm:$0xf]
    %v405 = vld [vmem:[%s6 + $0x2c] sm:$0xf]
    %v406 = vld [vmem:[%s6 + $0x30] sm:$0xf]
    %v407 = vld [vmem:[%s6 + $0x34] sm:$0xf]
    %v408 = vld [vmem:[%s6 + $0x38] sm:$0xf]
    %v409 = vld [vmem:[%s6 + $0x3c] sm:$0xf]
    %v410 = vld [vmem:[%s6 + $0x40] sm:$0xf]
    %v411 = vld [vmem:[%s6 + $0x44] sm:$0xf]
    %v412 = vld [vmem:[%s6 + $0x48] sm:$0xf]
    %v413 = vld [vmem:[%s6 + $0x4c] sm:$0xf]
    %v414 = vld [vmem:[%s6 + $0x50] sm:$0xf]
    %v415 = vld [vmem:[%s6 + $0x54] sm:$0xf]
    %v416 = vld [vmem:[%s6 + $0x58] sm:$0xf]
    %v417 = vld [vmem:[%s6 + $0x5c] sm:$0xf]
    %v418 = vld [vmem:[%s6 + $0x60] sm:$0xf]
    %v419 = vld [vmem:[%s6 + $0x64] sm:$0xf]
    %v420 = vld [vmem:[%s6 + $0x68] sm:$0xf]
    %v421 = vld [vmem:[%s6 + $0x6c] sm:$0xf]
    %v422 = vld [vmem:[%s6 + $0x70] sm:$0xf]
    %v423 = vld [vmem:[%s6 + $0x74] sm:$0xf]
    %v424 = vld [vmem:[%s6 + $0x78] sm:$0xf]
    %v425 = vld [vmem:[%s6 + $0x7c] sm:$0xf]
    %v426 = vld [vmem:[%s7] sm:$0x1]
    %v428 = vlaneseq
    %v429 = vshrl.u32 %v428, 7
    %v430 = vsub.s32 0, %v429
    %v431 = vrot.slane %v426, %v430
    %v465 = vunpack.c.l.b16 %v394
    %v466 = vunpack.c.l.b16 %v395
    %v467 = vunpack.c.l.b16 %v396
    %v468 = vunpack.c.l.b16 %v397
    %v469 = vunpack.c.l.b16 %v398
    %v470 = vunpack.c.l.b16 %v399
    %v471 = vunpack.c.l.b16 %v400
    %v472 = vunpack.c.l.b16 %v401
    %v473 = vunpack.c.l.b16 %v402
    %v474 = vunpack.c.l.b16 %v403
    %v475 = vunpack.c.l.b16 %v404
    %v476 = vunpack.c.l.b16 %v405
    %v477 = vunpack.c.l.b16 %v406
    %v478 = vunpack.c.l.b16 %v407
    %v479 = vunpack.c.l.b16 %v408
    %v480 = vunpack.c.l.b16 %v409
    %v481 = vunpack.c.l.b16 %v410
    %v482 = vunpack.c.l.b16 %v411
    %v483 = vunpack.c.l.b16 %v412
    %v484 = vunpack.c.l.b16 %v413
    %v485 = vunpack.c.l.b16 %v414
    %v486 = vunpack.c.l.b16 %v415
    %v487 = vunpack.c.l.b16 %v416
    %v488 = vunpack.c.l.b16 %v417
    %v489 = vunpack.c.l.b16 %v418
    %v490 = vunpack.c.l.b16 %v419
    %v491 = vunpack.c.l.b16 %v420
    %v492 = vunpack.c.l.b16 %v421
    %v493 = vunpack.c.l.b16 %v422
    %v494 = vunpack.c.l.b16 %v423
    %v495 = vunpack.c.l.b16 %v424
    %v496 = vunpack.c.l.b16 %v425
    %v497 = vpack.c.b16 %v466, %v465
    %v498 = vpack.c.b16 %v468, %v467
    %v499 = vpack.c.b16 %v470, %v469
    %v500 = vpack.c.b16 %v472, %v471
    %v501 = vpack.c.b16 %v474, %v473
    %v502 = vpack.c.b16 %v476, %v475
    %v503 = vpack.c.b16 %v478, %v477
    %v504 = vpack.c.b16 %v480, %v479
    %v505 = vpack.c.b16 %v482, %v481
    %v506 = vpack.c.b16 %v484, %v483
    %v507 = vpack.c.b16 %v486, %v485
    %v508 = vpack.c.b16 %v488, %v487
    %v509 = vpack.c.b16 %v490, %v489
    %v510 = vpack.c.b16 %v492, %v491
    %v511 = vpack.c.b16 %v494, %v493
    %v512 = vpack.c.b16 %v496, %v495
    %529 = vmatprep.subr.bf16.mxu0 0
    %530 = vmatpush1.bf16.msra.mxu0 %v497
    %531 = vmatprep.subr.bf16.mxu0 0
    %532 = vmatpush1.bf16.msra.mxu0 %v498
    %533 = vmatprep.subr.bf16.mxu0 0
    %534 = vmatpush1.bf16.msra.mxu0 %v499
    %535 = vmatprep.subr.bf16.mxu0 0
    %536 = vmatpush1.bf16.msra.mxu0 %v500
    %537 = vmatprep.subr.bf16.mxu0 0
    %538 = vmatpush1.bf16.msra.mxu0 %v501
    %539 = vmatprep.subr.bf16.mxu0 0
    %540 = vmatpush1.bf16.msra.mxu0 %v502
    %541 = vmatprep.subr.bf16.mxu0 0
    %542 = vmatpush1.bf16.msra.mxu0 %v503
    %543 = vmatprep.subr.bf16.mxu0 0
    %544 = vmatpush1.bf16.msra.mxu0 %v504
    %545 = vmatprep.subr.bf16.mxu0 0
    %546 = vmatpush1.bf16.msra.mxu0 %v505
    %547 = vmatprep.subr.bf16.mxu0 0
    %548 = vmatpush1.bf16.msra.mxu0 %v506
    %549 = vmatprep.subr.bf16.mxu0 0
    %550 = vmatpush1.bf16.msra.mxu0 %v507
    %551 = vmatprep.subr.bf16.mxu0 0
    %552 = vmatpush1.bf16.msra.mxu0 %v508
    %553 = vmatprep.subr.bf16.mxu0 0
    %554 = vmatpush1.bf16.msra.mxu0 %v509
    %555 = vmatprep.subr.bf16.mxu0 0
    %556 = vmatpush1.bf16.msra.mxu0 %v510
    %557 = vmatprep.subr.bf16.mxu0 0
    %558 = vmatpush1.bf16.msra.mxu0 %v511
    %559 = vmatprep.subr.bf16.mxu0 0
    %560 = vmatpush1.bf16.msra.mxu0 %v512
    %561 = vmatprep.mubr.bf16.mxu0 %v393
    %562 = vmatmul.mubr.bf16.gmra.mrb[0].mxu0 %v392
    %v563 = vpop.f32.mrb[0].mxu0
    %v564 = vadd.f32 %v431, %v563
    %v565 = vpop.f32.mrb[0].mxu0
    %v566 = vpop.f32.mrb[0].mxu0
    %v567 = vpop.f32.mrb[0].mxu0
    %568 = vdwg.mxu0
    %vm569 = vcmask 58368
    %570 = vst.msk [vmem:[#allocation5] sm:$0x3] %vm569, %v564
    // Predicated region
    $region38: #{tpu_custom_call.1} parent=1 // pred_check
      _
    $region39: #{tpu_custom_call.1} parent=1 // pred_check_branch
      %572 = sbr.rel (0) target = $region41
    $region40: #{tpu_custom_call.1} parent=1 // pred_region
      %s574 = ssub.s32 32, 32
      %575 = vsyncadd [#allocation4], %s574
      %s577 = sshll.u32 [#allocation5], 4
      %s578 = int_to_ptr.vmem [resolvable:$true] %s577
      %580 = dma.vmem_to_hbm [thread:$0]  %s578, 32, %s8, [#allocation4]
    $region41: #{tpu_custom_call.1} parent=1 // pred_fallthru
      _
    // Predicated region
    $region42: #{tpu_custom_call.1} parent=1 // pred_check
      _
    $region43: #{tpu_custom_call.1} parent=1 // pred_check_branch
      %582 = sbr.rel (0) target = $region45
    $region44: #{tpu_custom_call.1} parent=1 // pred_region
      %583 = dma.done [#allocation4], 32
    $region45: #{tpu_custom_call.1} parent=1 // pred_fallthru
      _
    %584 = vsyncpa [#allocation3], 1
    %585 = vsyncpa [#allocation4], 1

</llo_original>
